<compile_context>
chip_gen: v7x
topology: tpu7x:2x2x1
jax: 0.10.0
libtpu: 0.0.40
codegen_flags: <defaults>
</compile_context>

<pallas_src>
import jax
import jax.numpy as jnp
from jax.experimental import pallas as pl
from jax.experimental.pallas import tpu as pltpu


# --------------------------------------------------------------------------
# Kernel: scale by per-channel gate and transpose (C, tL) -> (tL, C).
# --------------------------------------------------------------------------
def _mc_scale_kernel(gate_ref, vis_ref, out_ref):
    # gate_ref: (tB, C, 1), vis_ref: (tB, C, tL), out_ref: (tB, tL, C)
    tB = vis_ref.shape[0]
    for b in range(tB):  # static unroll; tB is small (<= 8)
        scaled = vis_ref[b, :, :] * gate_ref[b, :, :]        # (C, tL), feature dtype
        # Cast to output dtype BEFORE the transpose (halves XLU bytes for bf16).
        out_ref[b, :, :] = scaled.astype(out_ref.dtype).T    # (tL, C)


# --------------------------------------------------------------------------
# Tile / VMEM sizing helpers
# --------------------------------------------------------------------------
_TILE_CANDIDATES = (8192, 4096, 2048, 1024, 512, 256, 128)


def _cdiv(a, b):
    return -(-a // b)


def _round_up(x, m):
    return ((x + m - 1) // m) * m


def _vmem_capacity_bytes():
    """Per-core VMEM capacity; conservative (v7x) fallback if unavailable."""
    try:
        info = pltpu.get_tpu_info()
        cap = getattr(info, "vmem_capacity_bytes", None)
        if cap:
            return int(cap)
    except Exception:
        pass
    return 64 << 20  # v7x per-TC VMEM — safe lower bound for sizing


def _choose_tiles(B, L, C, itemsize, vmem_budget, lane_cap):
    """Pick (tB, tL, nB, nL).  tL is always a multiple of 128; the grid uses
    cdiv so L (and B) need not divide exactly — boundary blocks are masked by
    the Pallas pipeline (OOB reads are garbage, OOB writes dropped)."""
    # ~2x double-buffered input + 2x output blocks + transpose scratch headroom.
    bytes_per_unit = 6 * C * itemsize                    # per unit of tB*tL
    max_units = max(128, vmem_budget // bytes_per_unit)  # max tB * tL affordable
    L_pad = _round_up(L, 128)

    tL = 128
    for cand in _TILE_CANDIDATES:
        if cand <= lane_cap and cand <= L_pad and cand <= max_units:
            tL = cand
            break

    # Batch blocking only when the whole (padded) L fits in a single lane tile.
    tB = 1
    if tL >= L_pad and B > 1:
        tB = int(min(B, 8, max(1, max_units // tL)))

    nL = _cdiv(L, tL)
    nB = _cdiv(B, tB)

    # Keep enough grid steps to overlap DMA/compute and feed both v7x cores.
    while nB * nL < 4:
        if tL > 128:
            tL //= 2
        elif tB > 1:
            tB = max(1, tB // 2)
        else:
            break
        nL = _cdiv(L, tL)
        nB = _cdiv(B, tB)
    return tB, tL, nB, nL


# --------------------------------------------------------------------------
# Wrapper
# --------------------------------------------------------------------------
def mutual_complementarity(vis_feat, mm_feat, H, W, w1v, w2v, w1m, w2m,
                           *, lane_tile=None):
    """vis_feat, mm_feat: (B, L, C) with L == H*W.  Returns (B, L, C)."""
    B, L, C = vis_feat.shape
    assert L == H * W
    assert mm_feat.shape == (B, L, C), "module requires vis_channel == mm_channel"

    # torch's reshape(B, C, H, W) reinterprets the contiguous buffer -> (B, C, L).
    vis_cl = vis_feat.reshape(B, C, L)
    mm_cl = mm_feat.reshape(B, C, L)

    # ---- SE gates precomputed in XLA (tiny, off the kernel's critical path) ----
    avg_v = jnp.mean(vis_cl.astype(jnp.float32), axis=-1)           # (B, C)
    avg_m = jnp.mean(mm_cl.astype(jnp.float32), axis=-1)            # (B, C)
    s_v = jax.nn.sigmoid(jnp.maximum(avg_v @ w1v.T, 0.0) @ w2v.T)   # (B, C)
    s_m = jax.nn.sigmoid(jnp.maximum(avg_m @ w1m.T, 0.0) @ w2m.T)   # (B, C)
    # Gate applied in the feature dtype (bf16 stays bf16 on v6e/v7x VALU).
    gate = (s_v + s_m).astype(vis_feat.dtype)[:, :, None]           # (B, C, 1)

    # ---- generation-aware VMEM budget & tile selection ----
    itemsize = jnp.dtype(vis_feat.dtype).itemsize
    vmem_cap = _vmem_capacity_bytes()
    vmem_budget = int(max(16 << 20, min(vmem_cap // 2, 48 << 20)))
    if lane_tile is None:
        lane_cap = 4096 if vmem_cap >= (100 << 20) else 2048   # v5e/v6e vs v7x
    else:
        lane_cap = max(128, (int(lane_tile) // 128) * 128)

    tB, tL, nB, nL = _choose_tiles(B, L, C, itemsize, vmem_budget, lane_cap)

    cost = pl.CostEstimate(
        flops=B * L * C,
        transcendentals=0,
        bytes_accessed=2 * B * L * C * itemsize + B * C * itemsize)

    return pl.pallas_call(
        _mc_scale_kernel,
        out_shape=jax.ShapeDtypeStruct((B, L, C), vis_feat.dtype),
        grid=(nB, nL),
        in_specs=[
            pl.BlockSpec((tB, C, 1), lambda bi, li: (bi, 0, 0)),     # gate
            pl.BlockSpec((tB, C, tL), lambda bi, li: (bi, 0, li)),   # vis (B,C,L) view
        ],
        out_specs=pl.BlockSpec((tB, tL, C), lambda bi, li: (bi, li, 0)),
        compiler_params=pltpu.CompilerParams(
            dimension_semantics=("parallel", "parallel"),
            vmem_limit_bytes=vmem_budget),
        cost_estimate=cost,
    )(gate, vis_cl)


# --------------------------------------------------------------------------
# Pure-JAX reference mirroring the PyTorch forward exactly (f32 math).
# --------------------------------------------------------------------------
def _reference(vis_feat, mm_feat, H, W, w1v, w2v, w1m, w2m):
    vis = vis_feat.astype(jnp.float32)
    mm = mm_feat.astype(jnp.float32)
    B, L, C = vis.shape
    V = vis.reshape(B, C, H, W)
    M = mm.reshape(B, C, H, W)
    avg_v = V.mean(axis=(2, 3))
    avg_m = M.mean(axis=(2, 3))
    s_v = jax.nn.sigmoid(jnp.maximum(avg_v @ w1v.T, 0.0) @ w2v.T)
    s_m = jax.nn.sigmoid(jnp.maximum(avg_m @ w1m.T, 0.0) @ w2m.T)
    vis_feat_vis = V * s_v[:, :, None, None]
    mm_feat_vis = V * s_m[:, :, None, None]
    out = (vis_feat_vis + mm_feat_vis).reshape(B, C, L)
    return jnp.transpose(out, (0, 2, 1))


def _run_case(key, B, C, H, W, ratio, dtype=jnp.float32, lane_tile=None):
    L = H * W
    hidden = max(1, C // ratio)
    k_vis, k_mm, k1, k2, k3, k4 = jax.random.split(key, 6)

    vis_feat = jax.random.normal(k_vis, (B, L, C), dtype=jnp.float32).astype(dtype)
    mm_feat = jax.random.normal(k_mm, (B, L, C), dtype=jnp.float32).astype(dtype)

    # torch.nn.Linear weights have shape (out_features, in_features); no bias.
    w1v = jax.random.normal(k1, (hidden, C), dtype=jnp.float32) * 0.1
    w2v = jax.random.normal(k2, (C, hidden), dtype=jnp.float32) * 0.1
    w1m = jax.random.normal(k3, (hidden, C), dtype=jnp.float32) * 0.1
    w2m = jax.random.normal(k4, (C, hidden), dtype=jnp.float32) * 0.1

    out = jax.block_until_ready(
        mutual_complementarity(vis_feat, mm_feat, H, W, w1v, w2v, w1m, w2m,
                               lane_tile=lane_tile))
    ref = jax.block_until_ready(
        _reference(vis_feat, mm_feat, H, W, w1v, w2v, w1m, w2m))

    assert out.shape == (B, L, C)
    tol = 2e-2 if dtype == jnp.bfloat16 else 1e-4
    assert jnp.allclose(out.astype(jnp.float32), ref, rtol=tol, atol=tol), \
        f"mismatch B={B} C={C} H={H} W={W} dtype={dtype}"


if __name__ == "__main__":
    key = jax.random.PRNGKey(0)
    keys = jax.random.split(key, 5)

    # 1) Narrow channels (C=32): in-kernel transpose, single HBM pass.
    _run_case(keys[0], B=2, C=32, H=16, W=16, ratio=16)

    # 2) C=128: lane-dense (tL, C) stores.
    _run_case(keys[1], B=2, C=128, H=16, W=16, ratio=16)

    # 3) Non-divisible L (H=W=14 -> L=196): cdiv grid + masked boundary block.
    _run_case(keys[2], B=3, C=32, H=14, W=14, ratio=16)

    # 4) Small L, larger B: batch-blocked tiles (tB > 1), partial batch block.
    _run_case(keys[3], B=9, C=32, H=8, W=16, ratio=16)

    # 5) bf16 features: bf16 multiply + bf16 transpose (v6e/v7x friendly).
    _run_case(keys[4], B=2, C=128, H=16, W=16, ratio=16, dtype=jnp.bfloat16)

    print("KERNEL_OK")
</pallas_src>

<mosaic_0001>
module attributes {stable_mosaic.version = 11 : i64} {
  func.func @_mc_scale_kernel(%arg0: i32, %arg1: i32, %arg2: memref<1x32x1xf32, #tpu.memory_space<vmem>>, %arg3: memref<1x32x128xf32, #tpu.memory_space<vmem>>, %arg4: memref<1x128x32xf32, #tpu.memory_space<vmem>>) attributes {dimension_semantics = [#tpu.dimension_semantics<parallel>, #tpu.dimension_semantics<parallel>], iteration_bounds = array<i64: 2, 2>, scalar_prefetch = 0 : i64, scratch_operands = 0 : i64, tpu.core_type = #tpu.core_type<tc>, window_params = [{transform_indices = @transform_0, window_bounds = array<i64: 1, 32, 1>}, {transform_indices = @transform_1, window_bounds = array<i64: 1, 32, 128>}, {transform_indices = @transform_2, window_bounds = array<i64: 1, 128, 32>}]} {
    %c0 = arith.constant 0 : index
    %c0_0 = arith.constant 0 : index
    %c0_1 = arith.constant 0 : index
    %0 = vector.load %arg3[%c0, %c0_0, %c0_1] : memref<1x32x128xf32, #tpu.memory_space<vmem>>, vector<1x32x128xf32>
    %1 = vector.shape_cast %0 : vector<1x32x128xf32> to vector<32x128xf32>
    %c0_2 = arith.constant 0 : index
    %c0_3 = arith.constant 0 : index
    %c0_4 = arith.constant 0 : index
    %2 = vector.load %arg2[%c0_2, %c0_3, %c0_4] : memref<1x32x1xf32, #tpu.memory_space<vmem>>, vector<1x32x1xf32>
    %3 = vector.shape_cast %2 : vector<1x32x1xf32> to vector<32x1xf32>
    %4 = vector.broadcast %3 : vector<32x1xf32> to vector<32x128xf32>
    %5 = arith.mulf %1, %4 : vector<32x128xf32>
    %6 = tpu.transpose %5, [1, 0] : vector<32x128xf32> -> vector<128x32xf32>
    %c0_5 = arith.constant 0 : index
    %c0_6 = arith.constant 0 : index
    %c0_7 = arith.constant 0 : index
    %7 = vector.load %arg4[%c0_5, %c0_6, %c0_7] : memref<1x128x32xf32, #tpu.memory_space<vmem>>, vector<1x128x32xf32>
    %8 = vector.shape_cast %7 : vector<1x128x32xf32> to vector<128x32xf32>
    %9 = vector.shape_cast %6 : vector<128x32xf32> to vector<1x128x32xf32>
    tpu.vector_store %arg4[%c0_5, %c0_6, %c0_7], %9 {strides = array<i32>} : memref<1x128x32xf32, #tpu.memory_space<vmem>>, vector<1x128x32xf32>,
    return
  }
  func.func @transform_0(%arg0: i32, %arg1: i32) -> (i32, i32, i32) {
    %c0_i32 = arith.constant 0 : i32
    %c0_i32_0 = arith.constant 0 : i32
    %c0_i32_1 = arith.constant 0 : i32
    return %arg0, %c0_i32, %c0_i32_0 : i32, i32, i32
  }
  func.func @transform_1(%arg0: i32, %arg1: i32) -> (i32, i32, i32) {
    %c0_i32 = arith.constant 0 : i32
    %c0_i32_0 = arith.constant 0 : i32
    return %arg0, %c0_i32, %arg1 : i32, i32, i32
  }
  func.func @transform_2(%arg0: i32, %arg1: i32) -> (i32, i32, i32) {
    %c0_i32 = arith.constant 0 : i32
    %c0_i32_0 = arith.constant 0 : i32
    return %arg0, %arg1, %c0_i32 : i32, i32, i32
  }
}

</mosaic_0001>

<llo_original>
// kernel: tpu_custom_call.1
$region0: #{tpu_custom_call.1}
  #allocation0 [shape = 'u32[]', space=smem, size = 0x4, offset = 0x4, fixed_abs, tag = 'smem constant byte address 0x4 - core index']
  #allocation1 [shape = 'u32[144,128]{1,0:T(1,128)}', space=vmem, size = 0x12000, scoped, tag = 'internal scratch']
  %s0 = inlined_call_operand.vmem [shape: f32[2,32,1], index: 0, kind: input, shape index: {}]
  %s1 = inlined_call_operand.hbm [shape: f32[2,32,256], index: 1, kind: input, shape index: {}]
  %s2 = inlined_call_operand.vmem [shape: f32[2,256,32], index: 2, kind: output, shape index: {}]
  %s3 = sld [smem:[#allocation0]]
  $region45: #{tpu_custom_call.1} parent=0
    _
  %s5 = ssub.s32 1, %s3
  %s6 = scalar_select 0, %s5, %s3
  $region1: #{tpu_custom_call.1} parent=0
    #allocation2 [shape = 'u8[32768]{0}', space=vmem, size = 0x8000, scoped, tag = 'input window, operand 1']
    #allocation3 [shape = 's32[2]{0}', space=sflag, size = 0x8, scoped, tag = 'scoped memory for tpu_custom_call.1']
    %7 = vsyncpa [#allocation3], 0
    %s8 = scalar_lea.sflag [#allocation3], 1
    %9 = vsyncpa %s8, 0
    loop: start=0, step=1, limit=6
    $region2: #{tpu_custom_call.1} parent=1 // loop_pre_header
      _
    $region3: #{tpu_custom_call.1} parent=1 // loop_header
      %s11 = sphi 0, %s15
      %p12 = scmp.ge.s32.totalorder %s11, 6
      %s18 = sphi 0, %s30
      %s19 = sphi 0, %s26
      %s20 = sphi 0, %s18
      %s21 = sphi 0, %s19
      %s22 = sphi 0, %s20
      %s23 = sphi 0, %s21
      %s33 = sphi 0, %s35
      %s36 = sphi 0, %s33
      %s37 = sphi 0, %s36
      %s53 = sphi 0, %s37
      %s61 = sphi 0, %s63
      %s64 = sphi 0, %s61
      %s65 = sphi 0, %s64
      %s81 = sphi 0, %s65
      %s89 = sphi 0, %s91
      %s92 = sphi 0, %s89
      %s93 = sphi 0, %s92
      %s109 = sphi 0, %s93
    $region4: #{tpu_custom_call.1} parent=1 // loop_header_branch
      %14 = sbr.rel (%p12) target = $region8
    $region5: #{tpu_custom_call.1} parent=1 // loop_body
      %s16 = ssub.s32 %s11, 1
      %s17 = ssub.s32 %s11, 2
      %s24 = sadd.s32 1, %s19
      %p25 = scmp.ge.s32.totalorder %s24, 2
      %s26 = scalar_select %p25, 0, %s24
      %s27 = sadd.s32 1, %s18
      %s28 = scalar_select %p25, %s27, %s18
      %p29 = scmp.ge.s32.totalorder %s28, 2
      %s30 = scalar_select %p29, 0, %s28
      %s31 = ssub.s32 %s18, %s30
      %p32 = scmp.eq.s32.totalorder %s31, 0
      %s34 = sadd.s32 %s33, 1
      %s35 = scalar_select %p32, %s33, %s34
      %p38 = pneg %p32
      %p39 = scmp.eq.s32.totalorder %s11, 3
      %p40 = por %p38, %p39
      %p41 = scmp.ne.s32.totalorder %s33, %s36
      %p42 = scmp.eq.s32.totalorder %s11, 0
      %p43 = por %p41, %p42
      %p44 = scmp.ne.s32.totalorder %s33, %s36
      %p45 = scmp.eq.s32.totalorder %s16, 3
      %p46 = por %p44, %p45
      %p47 = scmp.ne.s32.totalorder %s36, %s37
      %p48 = scmp.eq.s32.totalorder %s16, 0
      %p49 = por %p47, %p48
      %p50 = scmp.ne.s32.totalorder %s36, %s37
      %p51 = scmp.eq.s32.totalorder %s17, 3
      %p52 = por %p50, %p51
      %p54 = scmp.ne.s32.totalorder %s37, %s53
      %p55 = scmp.eq.s32.totalorder %s17, 0
      %p56 = por %p54, %p55
      %s57 = ssub.s32 %s18, %s30
      %s58 = ssub.s32 %s19, %s26
      %s59 = sor.u32 %s57, %s58
      %p60 = scmp.eq.s32.totalorder %s59, 0
      %s62 = sadd.s32 %s61, 1
      %s63 = scalar_select %p60, %s61, %s62
      %p66 = pneg %p60
      %p67 = scmp.eq.s32.totalorder %s11, 3
      %p68 = por %p66, %p67
      %p69 = scmp.ne.s32.totalorder %s61, %s64
      %p70 = scmp.eq.s32.totalorder %s11, 0
      %p71 = por %p69, %p70
      %p72 = scmp.ne.s32.totalorder %s61, %s64
      %p73 = scmp.eq.s32.totalorder %s16, 3
      %p74 = por %p72, %p73
      %p75 = scmp.ne.s32.totalorder %s64, %s65
      %p76 = scmp.eq.s32.totalorder %s16, 0
      %p77 = por %p75, %p76
      %p78 = scmp.ne.s32.totalorder %s64, %s65
      %p79 = scmp.eq.s32.totalorder %s17, 3
      %p80 = por %p78, %p79
      %p82 = scmp.ne.s32.totalorder %s65, %s81
      %p83 = scmp.eq.s32.totalorder %s17, 0
      %p84 = por %p82, %p83
      %s85 = ssub.s32 %s18, %s30
      %s86 = ssub.s32 %s19, %s26
      %s87 = sor.u32 %s85, %s86
      %p88 = scmp.eq.s32.totalorder %s87, 0
      %s90 = sadd.s32 %s89, 1
      %s91 = scalar_select %p88, %s89, %s90
      %p94 = pneg %p88
      %p95 = scmp.eq.s32.totalorder %s11, 3
      %p96 = por %p94, %p95
      %p97 = scmp.ne.s32.totalorder %s89, %s92
      %p98 = scmp.eq.s32.totalorder %s11, 0
      %p99 = por %p97, %p98
      %p100 = scmp.ne.s32.totalorder %s89, %s92
      %p101 = scmp.eq.s32.totalorder %s16, 3
      %p102 = por %p100, %p101
      %p103 = scmp.ne.s32.totalorder %s92, %s93
      %p104 = scmp.eq.s32.totalorder %s16, 0
      %p105 = por %p103, %p104
      %p106 = scmp.ne.s32.totalorder %s92, %s93
      %p107 = scmp.eq.s32.totalorder %s17, 3
      %p108 = por %p106, %p107
      %p110 = scmp.ne.s32.totalorder %s93, %s109
      %p111 = scmp.eq.s32.totalorder %s17, 0
      %p112 = por %p110, %p111
      %p113 = scmp.le.s32.totalorder 1, %s11
      %p114 = scmp.lt.s32.totalorder %s11, 5
      %p115 = pnand %p113, %p114
      %p116 = pneg %p115
      // Predicated region
      $region9: #{tpu_custom_call.1} parent=5 // pred_check
        _
      $region10: #{tpu_custom_call.1} parent=5 // pred_check_branch
        %118 = sbr.rel (%p115) target = $region12
      $region11: #{tpu_custom_call.1} parent=5 // pred_region
        %s119 = ssub.s32 %s11, 1
      $region12: #{tpu_custom_call.1} parent=5 // pred_fallthru
        _
      %p120 = scmp.lt.s32.totalorder %s11, 4
      // Predicated region
      $region13: #{tpu_custom_call.1} parent=5 // pred_check
        %p121 = pneg %p120
      $region14: #{tpu_custom_call.1} parent=5 // pred_check_branch
        %123 = sbr.rel (%p121) target = $region16
      $region15: #{tpu_custom_call.1} parent=5 // pred_region
        // Predicated region
        $region17: #{tpu_custom_call.1} parent=15 // pred_check
          %p124 = pneg %p43
        $region18: #{tpu_custom_call.1} parent=15 // pred_check_branch
          %126 = sbr.rel (%p124) target = $region20
        $region19: #{tpu_custom_call.1} parent=15 // pred_region
          %p127 = scmp.lt.s32.totalorder %s18, 1
          %s128 = scalar_select %p127, %s18, 1
          %s129 = smul.addr %s128, 4
          %s130 = smul.addr %s129, 8
          %s131 = scalar_lea.vmem %s0, %s130
        $region20: #{tpu_custom_call.1} parent=15 // pred_fallthru
          _
        // Predicated region
        $region21: #{tpu_custom_call.1} parent=15 // pred_check
          %p132 = pneg %p71
        $region22: #{tpu_custom_call.1} parent=15 // pred_check_branch
          %134 = sbr.rel (%p132) target = $region24
        $region23: #{tpu_custom_call.1} parent=15 // pred_region
          %s135 = sand.u32 %s61, 1
          %s136 = scalar_lea.sflag [#allocation3], %s135
          %s137 = sand.u32 %s61, 1
          %s138 = smul.addr %s137, 32
          %s139 = scalar_lea.vmem [#allocation2], %s138
          %s141 = ssub.s32 512, 512
          %142 = vsyncadd %s136, %s141
          %s143 = smul.addr %s18, 8
          %s144 = sadd.s32 %s19, %s143
          %s145 = smul.addr %s144, 128
          %s146 = scalar_lea.hbm %s1, %s145
          %s147 = sshll.u32 %s139, 4
          %s148 = int_to_ptr.vmem [resolvable:$true] %s147
          %153 = dma.hbm_to_vmem [thread:$0]  %s146, 512, %s148, %s136, 256, 128, 8
        $region24: #{tpu_custom_call.1} parent=15 // pred_fallthru
          _
      $region16: #{tpu_custom_call.1} parent=5 // pred_fallthru
        _
      %p154 = scmp.le.s32.totalorder 1, %s11
      %p155 = scmp.lt.s32.totalorder %s11, 5
      %p156 = pnand %p154, %p155
      %p157 = pneg %p156
      // Predicated region
      $region25: #{tpu_custom_call.1} parent=5 // pred_check
        _
      $region26: #{tpu_custom_call.1} parent=5 // pred_check_branch
        %159 = sbr.rel (%p156) target = $region28
      $region27: #{tpu_custom_call.1} parent=5 // pred_region
        %s160 = ssub.s32 %s11, 1
        %s161 = sand.u32 %s64, 1
        %s162 = scalar_lea.sflag [#allocation3], %s161
        %s163 = sand.u32 %s64, 1
        %s164 = smul.addr %s163, 32
        %s165 = scalar_lea.vmem [#allocation2], %s164
        // Predicated region
        $region29: #{tpu_custom_call.1} parent=27 // pred_check
          %p166 = pneg %p77
        $region30: #{tpu_custom_call.1} parent=27 // pred_check_branch
          %168 = sbr.rel (%p166) target = $region32
        $region31: #{tpu_custom_call.1} parent=27 // pred_region
          %169 = dma.done %s162, 512
        $region32: #{tpu_custom_call.1} parent=27 // pred_fallthru
          _
        %p170 = scmp.lt.s32.totalorder %s20, 1
        %s171 = scalar_select %p170, %s20, 1
        %s172 = smul.addr %s171, 4
        %s173 = smul.addr %s172, 8
        %s174 = scalar_lea.vmem %s0, %s173
        %p175 = pneg %p49
        %p176 = pneg %p46
        %s177 = sand.u32 %s64, 1
        %s178 = scalar_lea.sflag [#allocation3], %s177
        %s179 = sand.u32 %s64, 1
        %s180 = smul.addr %s179, 32
        %s181 = scalar_lea.vmem [#allocation2], %s180
        %p182 = pneg %p77
        %p183 = pneg %p74
        %p184 = pneg %p105
        %p185 = pneg %p102
        %s186 = smul.u32 16, %s21
        %p187 = scmp.lt.s32.totalorder %s20, 1
        %s188 = scalar_select %p187, %s20, 1
        %p189 = scmp.lt.s32.totalorder %s186, 31
        %s190 = scalar_select %p189, %s186, 31
        %s191 = smul.addr %s188, 32
        %s192 = sadd.s32 %s190, %s191
        %s193 = smul.addr %s192, 8
        %s194 = scalar_lea.vmem %s2, %s193
        %p195 = scmp.lt.s32.totalorder %s20, 1
        %s196 = scalar_select %p195, %s20, 1
        %s197 = smul.addr %s196, 4
        %s198 = smul.addr %s197, 8
        %s199 = scalar_lea.vmem %s0, %s198
        %s200 = smul.u32 16, %s21
        %p201 = scmp.lt.s32.totalorder %s20, 1
        %s202 = scalar_select %p201, %s20, 1
        %p203 = scmp.lt.s32.totalorder %s200, 31
        %s204 = scalar_select %p203, %s200, 31
        %s205 = smul.addr %s202, 32
        %s206 = sadd.s32 %s204, %s205
        %s207 = smul.addr %s206, 8
        %s208 = scalar_lea.vmem %s2, %s207
        %s209 = smul.u32 16, %s21
        %v210 = vld [vmem:[%s165] sm:$0xff]
        %v211 = vld [vmem:[%s165 + $0x8] sm:$0xff]
        %v212 = vld [vmem:[%s165 + $0x10] sm:$0xff]
        %v213 = vld [vmem:[%s165 + $0x18] sm:$0xff]
        %v214 = vld [vmem:[%s199] sm:$0xff]
        %v215 = vld [vmem:[%s199 + $0x8] sm:$0xff]
        %v216 = vld [vmem:[%s199 + $0x10] sm:$0xff]
        %v217 = vld [vmem:[%s199 + $0x18] sm:$0xff]
        %219 = vset.pattern.permute.xlu0 0
        %220 = vperm.xlu0 %219, %v214
        %v221 = vpop.permute.xlu0 %220
        %224 = vset.pattern.permute.xlu0 0
        %225 = vperm.xlu0 %224, %v215
        %v226 = vpop.permute.xlu0 %225
        %229 = vset.pattern.permute.xlu0 0
        %230 = vperm.xlu0 %229, %v216
        %v231 = vpop.permute.xlu0 %230
        %234 = vset.pattern.permute.xlu0 0
        %235 = vperm.xlu0 %234, %v217
        %v236 = vpop.permute.xlu0 %235
        %v238 = vmul.f32 %v210, %v221
        %v239 = vmul.f32 %v211, %v226
        %v240 = vmul.f32 %v212, %v231
        %v241 = vmul.f32 %v213, %v236
        %242 = vxpose.xlu0.b32.start [1/16] %v238, 128
        %243 = vxpose.xlu0.b32.cont [2/16] %v239, 128
        %244 = vxpose.xlu0.b32.cont [3/16] %v240, 128
        %245 = vxpose.xlu0.b32.cont [4/16] %v241, 128
        %246 = vxpose.xlu0.b32.cont [5/16] 0.0, 128
        %247 = vxpose.xlu0.b32.cont [6/16] 0.0, 128
        %248 = vxpose.xlu0.b32.cont [7/16] 0.0, 128
        %249 = vxpose.xlu0.b32.cont [8/16] 0.0, 128
        %250 = vxpose.xlu0.b32.cont [9/16] 0.0, 128
        %251 = vxpose.xlu0.b32.cont [10/16] 0.0, 128
        %252 = vxpose.xlu0.b32.cont [11/16] 0.0, 128
        %253 = vxpose.xlu0.b32.cont [12/16] 0.0, 128
        %254 = vxpose.xlu0.b32.cont [13/16] 0.0, 128
        %255 = vxpose.xlu0.b32.cont [14/16] 0.0, 128
        %256 = vxpose.xlu0.b32.cont [15/16] 0.0, 128
        %257 = vxpose.xlu0.b32.end [16/16] 0.0, 128
        %v258 = vpop.trf.xlu0
        %v259 = vpop.trf.xlu0
        %v260 = vpop.trf.xlu0
        %v261 = vpop.trf.xlu0
        %v262 = vpop.trf.xlu0
        %v263 = vpop.trf.xlu0
        %v264 = vpop.trf.xlu0
        %v265 = vpop.trf.xlu0
        %v266 = vpop.trf.xlu0
        %v267 = vpop.trf.xlu0
        %v268 = vpop.trf.xlu0
        %v269 = vpop.trf.xlu0
        %v270 = vpop.trf.xlu0
        %v271 = vpop.trf.xlu0
        %v272 = vpop.trf.xlu0
        %v273 = vpop.trf.xlu0
        %vm274 = vcmask 261120
        %275 = vst.msk [vmem:[%s208] sm:$0xff] %vm274, %v258
        %276 = vst.msk [vmem:[%s208 + $0x8] sm:$0xff] %vm274, %v259
        %277 = vst.msk [vmem:[%s208 + $0x10] sm:$0xff] %vm274, %v260
        %278 = vst.msk [vmem:[%s208 + $0x18] sm:$0xff] %vm274, %v261
        %279 = vst.msk [vmem:[%s208 + $0x20] sm:$0xff] %vm274, %v262
        %280 = vst.msk [vmem:[%s208 + $0x28] sm:$0xff] %vm274, %v263
        %281 = vst.msk [vmem:[%s208 + $0x30] sm:$0xff] %vm274, %v264
        %282 = vst.msk [vmem:[%s208 + $0x38] sm:$0xff] %vm274, %v265
        %283 = vst.msk [vmem:[%s208 + $0x40] sm:$0xff] %vm274, %v266
        %284 = vst.msk [vmem:[%s208 + $0x48] sm:$0xff] %vm274, %v267
        %285 = vst.msk [vmem:[%s208 + $0x50] sm:$0xff] %vm274, %v268
        %286 = vst.msk [vmem:[%s208 + $0x58] sm:$0xff] %vm274, %v269
        %287 = vst.msk [vmem:[%s208 + $0x60] sm:$0xff] %vm274, %v270
        %288 = vst.msk [vmem:[%s208 + $0x68] sm:$0xff] %vm274, %v271
        %289 = vst.msk [vmem:[%s208 + $0x70] sm:$0xff] %vm274, %v272
        %290 = vst.msk [vmem:[%s208 + $0x78] sm:$0xff] %vm274, %v273
        %s291 = smul.u32 16, %s21
        %p292 = scmp.lt.s32.totalorder %s20, 1
        %s293 = scalar_select %p292, %s20, 1
        %p294 = scmp.lt.s32.totalorder %s291, 31
        %s295 = scalar_select %p294, %s291, 31
        %s296 = smul.addr %s293, 32
        %s297 = sadd.s32 %s295, %s296
        %s298 = smul.addr %s297, 8
        %s299 = scalar_lea.vmem %s2, %s298
        // Predicated region
        $region33: #{tpu_custom_call.1} parent=27 // pred_check
          %p300 = pneg %p102
        $region34: #{tpu_custom_call.1} parent=27 // pred_check_branch
          %302 = sbr.rel (%p300) target = $region36
        $region35: #{tpu_custom_call.1} parent=27 // pred_region
          %s303 = smul.u32 16, %s21
        $region36: #{tpu_custom_call.1} parent=27 // pred_fallthru
          _
      $region28: #{tpu_custom_call.1} parent=5 // pred_fallthru
        _
      %p304 = scmp.le.s32.totalorder 2, %s11
      // Predicated region
      $region37: #{tpu_custom_call.1} parent=5 // pred_check
        %p305 = pneg %p304
      $region38: #{tpu_custom_call.1} parent=5 // pred_check_branch
        %307 = sbr.rel (%p305) target = $region40
      $region39: #{tpu_custom_call.1} parent=5 // pred_region
        %s308 = ssub.s32 %s11, 2
        // Predicated region
        $region41: #{tpu_custom_call.1} parent=39 // pred_check
          %p309 = pneg %p108
        $region42: #{tpu_custom_call.1} parent=39 // pred_check_branch
          %311 = sbr.rel (%p309) target = $region44
        $region43: #{tpu_custom_call.1} parent=39 // pred_region
          %s312 = smul.u32 16, %s23
          %p313 = scmp.lt.s32.totalorder %s22, 1
          %s314 = scalar_select %p313, %s22, 1
          %p315 = scmp.lt.s32.totalorder %s312, 31
          %s316 = scalar_select %p315, %s312, 31
          %s317 = smul.addr %s314, 32
          %s318 = sadd.s32 %s316, %s317
          %s319 = smul.addr %s318, 8
          %s320 = scalar_lea.vmem %s2, %s319
        $region44: #{tpu_custom_call.1} parent=39 // pred_fallthru
          _
      $region40: #{tpu_custom_call.1} parent=5 // pred_fallthru
        _
    $region6: #{tpu_custom_call.1} parent=1 // loop_footer
      %s15 = sadd.s32 1, %s11
    $region7: #{tpu_custom_call.1} parent=1 // loop_footer_branch
      %10 = sbr.rel target = $region3
    $region8: #{tpu_custom_call.1} parent=1 // loop_exit
      _
    %321 = vsyncpa [#allocation3], 1
    %s322 = scalar_lea.sflag [#allocation3], 1
    %323 = vsyncpa %s322, 1

</llo_original>
